<compile_context>
chip_gen: v5e
topology: v5e:2x2
jax: 0.10.0
libtpu: 0.0.40
codegen_flags: <defaults>
</compile_context>

<pallas_src>
import functools

import jax
import jax.numpy as jnp
from jax.experimental import pallas as pl
from jax.experimental.pallas import tpu as pltpu


def _linear_relu_kernel(x_ref, w_ref, b_ref, o_ref):
    """One (tm, tn) output tile; grid axis 2 walks the K (reduction) axis.

    The output block's index_map ignores k, so o_ref stays resident in VMEM
    across the whole reduction and doubles as the f32 accumulator.
    """
    k = pl.program_id(2)

    @pl.when(k == 0)
    def _():
        o_ref[...] = jnp.zeros_like(o_ref)

    o_ref[...] += jnp.dot(
        x_ref[...], w_ref[...], preferred_element_type=jnp.float32
    )

    @pl.when(k == pl.num_programs(2) - 1)
    def _():
        # Fused epilogue: bias add + ReLU.
        o_ref[...] = jnp.maximum(o_ref[...] + b_ref[...].astype(jnp.float32), 0.0)


def _round_up(x, m):
    return (x + m - 1) // m * m


def _choose_tiles(M, N, K):
    """Tile heuristic (works on v5e/v6e/v7x default scoped VMEM budgets).

    Worst-case live VMEM (double-buffered f32):  ~9 MiB, well under the 16 MiB
    (v5e) / 32 MiB (v6e, v7x) scoped defaults, so no vmem_limit override needed.
    """
    # M (batch) tile: never split skinny batches; 256 rows otherwise.
    tm = M if M <= 256 else 256
    # N (output-feature) tile: lane-dense multiple of 128, capped at 512.
    tn = _round_up(N, 128) if N <= 512 else 512
    # K (reduction) tile: whole reduction when it fits comfortably, otherwise
    # large 128-aligned chunks (larger for skinny-M, which is HBM-bound on W).
    k_cap = 2048 if M <= 64 else 1024
    tk = K if K <= k_cap else k_cap
    return tm, tn, tk


def _pad2(a, rows, cols):
    pr, pc = rows - a.shape[0], cols - a.shape[1]
    if pr == 0 and pc == 0:
        return a
    return jnp.pad(a, ((0, pr), (0, pc)))


@functools.partial(jax.jit, static_argnames=("compute_dtype",))
def linear_relu(x, w_t, b, *, compute_dtype=None):
    """x: (M, K), w_t: (K, N) (pre-transposed torch weight), b: (N,).

    compute_dtype: optionally cast x/w_t (e.g. jnp.bfloat16 on v6e/v7x) while
    keeping f32 accumulation and f32 output.
    """
    M, K = x.shape
    K2, N = w_t.shape
    assert K == K2 and b.shape == (N,)

    if compute_dtype is not None:
        x = x.astype(compute_dtype)
        w_t = w_t.astype(compute_dtype)

    tm, tn, tk = _choose_tiles(M, N, K)
    Mp, Np, Kp = _round_up(M, tm), _round_up(N, tn), _round_up(K, tk)

    xp = _pad2(x, Mp, Kp)
    wp = _pad2(w_t, Kp, Np)
    bp = _pad2(b.reshape(1, N), 1, Np)  # keep bias 2-D: last dim -> lanes

    grid = (Mp // tm, Np // tn, Kp // tk)
    out = pl.pallas_call(
        _linear_relu_kernel,
        out_shape=jax.ShapeDtypeStruct((Mp, Np), jnp.float32),
        grid_spec=pltpu.PrefetchScalarGridSpec(
            num_scalar_prefetch=0,
            grid=grid,
            in_specs=[
                pl.BlockSpec((tm, tk), lambda i, j, k: (i, k)),   # x tile
                pl.BlockSpec((tk, tn), lambda i, j, k: (k, j)),   # w_t tile
                pl.BlockSpec((1, tn), lambda i, j, k: (0, j)),    # bias tile
            ],
            out_specs=pl.BlockSpec((tm, tn), lambda i, j, k: (i, j)),
        ),
        compiler_params=pltpu.CompilerParams(
            dimension_semantics=("parallel", "parallel", "arbitrary"),
        ),
    )(xp, wp, bp)

    if (Mp, Np) != (M, N):
        out = out[:M, :N]
    return out


class LinearPallas:
    """Mirror of the torch `Linear` module (eval mode)."""

    def __init__(self, in_channels, out_channels, use_dropout=True, *, key):
        kw, kb = jax.random.split(key)
        # Deterministic init matching nn.Linear's uniform(-1/sqrt(fan_in), ...)
        bound = 1.0 / float(in_channels) ** 0.5
        w = jax.random.uniform(
            kw, (out_channels, in_channels), jnp.float32, -bound, bound
        )
        # Store pre-transposed (in_features, out_features): transpose happens
        # exactly once at init, never per forward call.
        self.weight_t = jnp.asarray(w.T)
        self.bias = jax.random.uniform(
            kb, (out_channels,), jnp.float32, -bound, bound
        )
        self.use_dropout = use_dropout

    def __call__(self, x):
        y = linear_relu(x, self.weight_t, self.bias)
        # TODO(synk): training-mode Dropout(p=0.5) via pltpu.prng_random_bits;
        # eval-mode dropout is the identity, which is what we apply here.
        return y


if __name__ == "__main__":
    key = jax.random.PRNGKey(0)
    k_in, k_mod, k_in2, k_mod2 = jax.random.split(key, 4)

    # Shapes consistent with the module: (batch, in_features) -> (batch, out_features)
    batch, in_channels, out_channels = 8, 32, 128
    x = jax.random.normal(k_in, (batch, in_channels), jnp.float32)
    mod = LinearPallas(in_channels, out_channels, use_dropout=True, key=k_mod)
    y = jax.block_until_ready(mod(x))

    ref = jnp.maximum(x @ mod.weight_t + mod.bias, 0.0)
    assert y.shape == (batch, out_channels)
    assert jnp.allclose(y, ref, atol=1e-5, rtol=1e-5)

    # Ragged shapes: exercise the padding / tile-selection path.
    b2, ic2, oc2 = 6, 50, 100
    x2 = jax.random.normal(k_in2, (b2, ic2), jnp.float32)
    mod2 = LinearPallas(ic2, oc2, use_dropout=False, key=k_mod2)
    y2 = jax.block_until_ready(mod2(x2))

    ref2 = jnp.maximum(x2 @ mod2.weight_t + mod2.bias, 0.0)
    assert y2.shape == (b2, oc2)
    assert jnp.allclose(y2, ref2, atol=1e-5, rtol=1e-5)

    print("KERNEL_OK")
</pallas_src>

<mosaic_0001>
module attributes {stable_mosaic.version = 11 : i64} {
  func.func @_linear_relu_kernel(%arg0: i32, %arg1: i32, %arg2: i32, %arg3: memref<8x32xf32, #tpu.memory_space<vmem>>, %arg4: memref<32x128xf32, #tpu.memory_space<vmem>>, %arg5: memref<1x128xf32, #tpu.memory_space<vmem>>, %arg6: memref<8x128xf32, #tpu.memory_space<vmem>>) attributes {dimension_semantics = [#tpu.dimension_semantics<parallel>, #tpu.dimension_semantics<parallel>, #tpu.dimension_semantics<arbitrary>], iteration_bounds = array<i64: 1, 1, 1>, scalar_prefetch = 0 : i64, scratch_operands = 0 : i64, tpu.core_type = #tpu.core_type<tc>, window_params = [{transform_indices = @transform_0, window_bounds = array<i64: 8, 32>}, {transform_indices = @transform_1, window_bounds = array<i64: 32, 128>}, {transform_indices = @transform_2, window_bounds = array<i64: 1, 128>}, {transform_indices = @transform_3, window_bounds = array<i64: 8, 128>}]} {
    %c0_i32 = arith.constant 0 : i32
    %0 = arith.cmpi eq, %arg2, %c0_i32 : i32
    %1 = arith.extui %0 : i1 to i32
    %c0_i32_0 = arith.constant 0 : i32
    %2 = arith.cmpi ne, %1, %c0_i32_0 : i32
    scf.if %2 {
      %cst_10 = arith.constant 0.000000e+00 : f32
      %12 = vector.broadcast %cst_10 : f32 to vector<8x128xf32>
      %c0_11 = arith.constant 0 : index
      %c0_12 = arith.constant 0 : index
      %13 = vector.load %arg6[%c0_11, %c0_12] : memref<8x128xf32, #tpu.memory_space<vmem>>, vector<8x128xf32>
      tpu.vector_store %arg6[%c0_11, %c0_12], %12 {strides = array<i32>} : memref<8x128xf32, #tpu.memory_space<vmem>>, vector<8x128xf32>,
    } else {
    }
    %c0 = arith.constant 0 : index
    %c0_1 = arith.constant 0 : index
    %3 = vector.load %arg6[%c0, %c0_1] : memref<8x128xf32, #tpu.memory_space<vmem>>, vector<8x128xf32>
    %c0_2 = arith.constant 0 : index
    %c0_3 = arith.constant 0 : index
    %4 = vector.load %arg3[%c0_2, %c0_3] : memref<8x32xf32, #tpu.memory_space<vmem>>, vector<8x32xf32>
    %c0_4 = arith.constant 0 : index
    %c0_5 = arith.constant 0 : index
    %5 = vector.load %arg4[%c0_4, %c0_5] : memref<32x128xf32, #tpu.memory_space<vmem>>, vector<32x128xf32>
    %cst = arith.constant dense<0.000000e+00> : vector<8x128xf32>
    %6 = tpu.matmul %4, %5, %cst {dimension_numbers = #tpu.dot_dimension_numbers<[1], [0], [0], [1], [0, 0, 1, 1], [], []>} : vector<8x32xf32>, vector<32x128xf32>, vector<8x128xf32> -> vector<8x128xf32>
    %7 = arith.addf %3, %6 : vector<8x128xf32>
    %c0_6 = arith.constant 0 : index
    %c0_7 = arith.constant 0 : index
    %8 = vector.load %arg6[%c0_6, %c0_7] : memref<8x128xf32, #tpu.memory_space<vmem>>, vector<8x128xf32>
    tpu.vector_store %arg6[%c0_6, %c0_7], %7 {strides = array<i32>} : memref<8x128xf32, #tpu.memory_space<vmem>>, vector<8x128xf32>,
    %c0_i32_8 = arith.constant 0 : i32
    %9 = arith.cmpi eq, %arg2, %c0_i32_8 : i32
    %10 = arith.extui %9 : i1 to i32
    %c0_i32_9 = arith.constant 0 : i32
    %11 = arith.cmpi ne, %10, %c0_i32_9 : i32
    scf.if %11 {
      %c0_10 = arith.constant 0 : index
      %c0_11 = arith.constant 0 : index
      %12 = vector.load %arg6[%c0_10, %c0_11] : memref<8x128xf32, #tpu.memory_space<vmem>>, vector<8x128xf32>
      %c0_12 = arith.constant 0 : index
      %c0_13 = arith.constant 0 : index
      %13 = vector.load %arg5[%c0_12, %c0_13] : memref<1x128xf32, #tpu.memory_space<vmem>>, vector<1x128xf32>
      %14 = vector.broadcast %13 : vector<1x128xf32> to vector<8x128xf32>
      %15 = arith.addf %12, %14 : vector<8x128xf32>
      %cst_14 = arith.constant 0.000000e+00 : f32
      %16 = vector.broadcast %cst_14 : f32 to vector<8x128xf32>
      %17 = arith.maximumf %15, %16 : vector<8x128xf32>
      %c0_15 = arith.constant 0 : index
      %c0_16 = arith.constant 0 : index
      %18 = vector.load %arg6[%c0_15, %c0_16] : memref<8x128xf32, #tpu.memory_space<vmem>>, vector<8x128xf32>
      tpu.vector_store %arg6[%c0_15, %c0_16], %17 {strides = array<i32>} : memref<8x128xf32, #tpu.memory_space<vmem>>, vector<8x128xf32>,
    } else {
    }
    return
  }
  func.func @transform_0(%arg0: i32, %arg1: i32, %arg2: i32) -> (i32, i32) {
    %c0_i32 = arith.constant 0 : i32
    return %arg0, %arg2 : i32, i32
  }
  func.func @transform_1(%arg0: i32, %arg1: i32, %arg2: i32) -> (i32, i32) {
    %c0_i32 = arith.constant 0 : i32
    return %arg2, %arg1 : i32, i32
  }
  func.func @transform_2(%arg0: i32, %arg1: i32, %arg2: i32) -> (i32, i32) {
    %c0_i32 = arith.constant 0 : i32
    %c0_i32_0 = arith.constant 0 : i32
    return %c0_i32, %arg1 : i32, i32
  }
  func.func @transform_3(%arg0: i32, %arg1: i32, %arg2: i32) -> (i32, i32) {
    %c0_i32 = arith.constant 0 : i32
    return %arg0, %arg1 : i32, i32
  }
}

</mosaic_0001>

<llo_original>
// kernel: linear_relu.1
$region0: #{linear_relu.1}
  #allocation0 [shape = 'u32[]', space=smem, size = 0x4, offset = 0x4, fixed_abs, tag = 'smem constant byte address 0x4 - core index']
  #allocation1 [shape = 'u32[72,128]{1,0:T(1,128)}', space=vmem, size = 0x9000, scoped, tag = 'internal scratch']
  %s0 = inlined_call_operand.hbm [shape: f32[8,32], index: 0, kind: input, shape index: {}]
  %s1 = inlined_call_operand.hbm [shape: f32[32,128], index: 1, kind: input, shape index: {}]
  %s2 = inlined_call_operand.vmem [shape: f32[1,128], index: 2, kind: input, shape index: {}]
  %s3 = inlined_call_operand.hbm [shape: f32[8,128], index: 3, kind: output, shape index: {}]
  %s4 = sld [smem:[#allocation0]]
  $region38: #{linear_relu.1} parent=0
    _
  %s6 = ssub.s32 1, %s4
  %s7 = scalar_select 0, %s6, %s4
  $region1: #{linear_relu.1} parent=0
    #allocation2 [shape = 'u8[4096]{0}', space=vmem, size = 0x1000, scoped, tag = 'input window, operand 0, single buffered']
    #allocation3 [shape = 's32[1]{0}', space=sflag, size = 0x4, scoped, tag = 'scoped memory for linear_relu.1']
    #allocation4 [shape = 's32[1]{0}', space=sflag, size = 0x4, scoped, tag = 'scoped memory for linear_relu.1']
    #allocation5 [shape = 'u8[16384]{0}', space=vmem, size = 0x4000, scoped, tag = 'input window, operand 1, single buffered']
    #allocation6 [shape = 's32[1]{0}', space=sflag, size = 0x4, scoped, tag = 'scoped memory for linear_relu.1']
    #allocation7 [shape = 'u8[4096]{0}', space=vmem, size = 0x1000, scoped, tag = 'output window, operand 0, single buffered']
    %8 = vsyncpa [#allocation3], 0
    %9 = vsyncpa [#allocation6], 0
    %10 = vsyncpa [#allocation4], 0
    // Predicated region
    $region2: #{linear_relu.1} parent=1 // pred_check
      _
    $region3: #{linear_relu.1} parent=1 // pred_check_branch
      %12 = sbr.rel (0) target = $region5
    $region4: #{linear_relu.1} parent=1 // pred_region
      %14 = vsyncadd [#allocation3], 0
      %s16 = sshll.u32 %s0, 4
      %s17 = int_to_ptr.hbm [resolvable:$true] %s16
      %s18 = sshll.u32 [#allocation2], 4
      %s19 = int_to_ptr.vmem [resolvable:$true] %s18
      %21 = dma.hbm_to_vmem [thread:$0]  %s17, 128, %s19, [#allocation3]
    $region5: #{linear_relu.1} parent=1 // pred_fallthru
      _
    // Predicated region
    $region6: #{linear_relu.1} parent=1 // pred_check
      _
    $region7: #{linear_relu.1} parent=1 // pred_check_branch
      %23 = sbr.rel (0) target = $region9
    $region8: #{linear_relu.1} parent=1 // pred_region
      %25 = vsyncadd [#allocation6], 0
      %s26 = sshll.u32 %s1, 4
      %s27 = int_to_ptr.hbm [resolvable:$true] %s26
      %s28 = sshll.u32 [#allocation5], 4
      %s29 = int_to_ptr.vmem [resolvable:$true] %s28
      %34 = dma.hbm_to_vmem [thread:$0]  %s27, 512, %s29, [#allocation6], 128, 128, 8
    $region9: #{linear_relu.1} parent=1 // pred_fallthru
      _
    // Predicated region
    $region10: #{linear_relu.1} parent=1 // pred_check
      _
    $region11: #{linear_relu.1} parent=1 // pred_check_branch
      %36 = sbr.rel (0) target = $region13
    $region12: #{linear_relu.1} parent=1 // pred_region
      _
    $region13: #{linear_relu.1} parent=1 // pred_fallthru
      _
    // Predicated region
    $region14: #{linear_relu.1} parent=1 // pred_check
      _
    $region15: #{linear_relu.1} parent=1 // pred_check_branch
      %38 = sbr.rel (0) target = $region17
    $region16: #{linear_relu.1} parent=1 // pred_region
      %40 = dma.done [#allocation3], 128
    $region17: #{linear_relu.1} parent=1 // pred_fallthru
      _
    // Predicated region
    $region18: #{linear_relu.1} parent=1 // pred_check
      _
    $region19: #{linear_relu.1} parent=1 // pred_check_branch
      %42 = sbr.rel (0) target = $region21
    $region20: #{linear_relu.1} parent=1 // pred_region
      %44 = dma.done [#allocation6], 512
    $region21: #{linear_relu.1} parent=1 // pred_fallthru
      _
    %p45 = scmp.eq.s32.totalorder 0, 0
    // Predicated region
    $region22: #{linear_relu.1} parent=1 // pred_check
      %p46 = pneg %p45
    $region23: #{linear_relu.1} parent=1 // pred_check_branch
      %48 = sbr.rel (%p46) target = $region25
    $region24: #{linear_relu.1} parent=1 // pred_region
      %49 = vst [vmem:[#allocation7] sm:$0xff] 0.0
    $region25: #{linear_relu.1} parent=1 // pred_fallthru
      _
    %v50 = vld [vmem:[#allocation7] sm:$0xff]
    %v51 = vld [vmem:[#allocation2] sm:$0xff]
    %v52 = vld [vmem:[#allocation5] sm:$0xff]
    %v53 = vld [vmem:[#allocation5 + $0x8] sm:$0xff]
    %v54 = vld [vmem:[#allocation5 + $0x10] sm:$0xff]
    %v55 = vld [vmem:[#allocation5 + $0x18] sm:$0xff]
    %vm56 = vcmask 261120
    %v58 = vsel %vm56, %v51, 0
    %60 = vmatpush.msra.mxu0 0.0
    %61 = vmatpush.msra.mxu0 0.0
    %62 = vmatpush.msra.mxu0 0.0
    %63 = vmatpush.msra.mxu0 0.0
    %64 = vmatpush.msra.mxu0 0.0
    %65 = vmatpush.msra.mxu0 0.0
    %66 = vmatpush.msra.mxu0 0.0
    %67 = vmatpush.msra.mxu0 0.0
    %68 = vmatpush.msra.mxu0 0.0
    %69 = vmatpush.msra.mxu0 0.0
    %70 = vmatpush.msra.mxu0 0.0
    %71 = vmatpush.msra.mxu0 0.0
    %72 = vmatpush.msra.mxu0 %v55
    %73 = vmatpush.msra.mxu0 %v54
    %74 = vmatpush.msra.mxu0 %v53
    %75 = vmatpush.msra.mxu0 %v52
    %76 = vmatmul.f32.gmra.mxu0 %v58
    %v77 = vpop.f32.mrf.mxu0
    %v78 = vadd.f32 0.0, %v77
    %79 = vdwg.mxu0
    %v80 = vadd.f32 %v50, %v78
    %81 = vst [vmem:[#allocation7] sm:$0xff] %v80
    // Predicated region
    $region26: #{linear_relu.1} parent=1 // pred_check
      %p82 = pneg %p45
    $region27: #{linear_relu.1} parent=1 // pred_check_branch
      %84 = sbr.rel (%p82) target = $region29
    $region28: #{linear_relu.1} parent=1 // pred_region
      %v85 = vld [vmem:[#allocation7] sm:$0xff]
      %v86 = vld [vmem:[%s2] sm:$0x1]
      %v88 = vperm.slane %v86, 0
      %v90 = vadd.f32 %v85, %v88
      %v91 = vmax.f32 %v90, 0.0
      %92 = vst [vmem:[#allocation7] sm:$0xff] %v91
    $region29: #{linear_relu.1} parent=1 // pred_fallthru
      _
    // Predicated region
    $region30: #{linear_relu.1} parent=1 // pred_check
      _
    $region31: #{linear_relu.1} parent=1 // pred_check_branch
      %94 = sbr.rel (0) target = $region33
    $region32: #{linear_relu.1} parent=1 // pred_region
      %96 = vsyncadd [#allocation4], 0
      %s98 = sshll.u32 [#allocation7], 4
      %s99 = int_to_ptr.vmem [resolvable:$true] %s98
      %s100 = sshll.u32 %s3, 4
      %s101 = int_to_ptr.hbm [resolvable:$true] %s100
      %103 = dma.vmem_to_hbm [thread:$0]  %s99, 128, %s101, [#allocation4]
    $region33: #{linear_relu.1} parent=1 // pred_fallthru
      _
    // Predicated region
    $region34: #{linear_relu.1} parent=1 // pred_check
      _
    $region35: #{linear_relu.1} parent=1 // pred_check_branch
      %105 = sbr.rel (0) target = $region37
    $region36: #{linear_relu.1} parent=1 // pred_region
      %107 = dma.done [#allocation4], 128
    $region37: #{linear_relu.1} parent=1 // pred_fallthru
      _
    %108 = vsyncpa [#allocation3], 1
    %109 = vsyncpa [#allocation6], 1
    %110 = vsyncpa [#allocation4], 1

</llo_original>
